<compile_context>
chip_gen: v7x
topology: tpu7x:2x2x1
jax: 0.10.0
libtpu: 0.0.40
codegen_flags: <defaults>
</compile_context>

<pallas_src>
import math

import jax
import jax.numpy as jnp
from jax.experimental import pallas as pl
from jax.experimental.pallas import tpu as pltpu


def _res_unit_kernel(x_ref, c_ref, w1x_ref, w1c_ref, b1_ref, w2_ref, b2_ref, o_ref):
    x = x_ref[...]            # (tm, Dx) bf16
    c = c_ref[...]            # (tm, Dc) bf16
    # layer1 on the (virtual) concat, fused as two MXU matmuls, f32 accumulate.
    h = (jnp.dot(x, w1x_ref[...], preferred_element_type=jnp.float32)
         + jnp.dot(c, w1c_ref[...], preferred_element_type=jnp.float32)
         + b1_ref[...])
    h = jnp.maximum(h, 0.0)                                  # relu, f32
    # layer2 + residual. Residual add kept in f32; output cast to o_ref dtype.
    out = (x.astype(jnp.float32)
           + jnp.dot(h.astype(w2_ref.dtype), w2_ref[...],
                     preferred_element_type=jnp.float32)
           + b2_ref[...])
    o_ref[...] = out.astype(o_ref.dtype)


def _round_up(v, m):
    return ((v + m - 1) // m) * m


def res_unit(x, c, w1, b1, w2, b2, *, tm=2048, compute_dtype=jnp.bfloat16):
    """x: (..., Dx), c: (..., Dc), w1: (Dx+Dc, H), b1: (H,), w2: (H, Dx), b2: (Dx,)."""
    Dx = x.shape[-1]
    Dc = c.shape[-1]
    H = w1.shape[1]
    batch_shape = x.shape[:-1]
    M = math.prod(batch_shape)

    # Row-tile alignment: 16 for bf16 sublane packing, 8 for f32.
    align = 16 if compute_dtype == jnp.bfloat16 else 8
    tm_eff = max(align, min(_round_up(tm, align), _round_up(M, align)))
    Mp = _round_up(M, tm_eff)
    grid = Mp // tm_eff

    x2 = x.reshape(M, Dx).astype(compute_dtype)
    c2 = c.reshape(M, Dc).astype(compute_dtype)
    if Mp != M:
        x2 = jnp.pad(x2, ((0, Mp - M), (0, 0)))
        c2 = jnp.pad(c2, ((0, Mp - M), (0, 0)))

    w1x = w1[:Dx, :].astype(compute_dtype)   # (Dx, H)
    w1c = w1[Dx:, :].astype(compute_dtype)   # (Dc, H)
    w2c = w2.astype(compute_dtype)           # (H, Dx)
    b1r = b1.reshape(1, H).astype(jnp.float32)
    b2r = b2.reshape(1, Dx).astype(jnp.float32)

    out = pl.pallas_call(
        _res_unit_kernel,
        out_shape=jax.ShapeDtypeStruct((Mp, Dx), x.dtype),
        grid_spec=pltpu.PrefetchScalarGridSpec(
            num_scalar_prefetch=0,
            grid=(grid,),
            in_specs=[
                pl.BlockSpec((tm_eff, Dx), lambda i: (i, 0)),   # x rows
                pl.BlockSpec((tm_eff, Dc), lambda i: (i, 0)),   # c rows
                pl.BlockSpec((Dx, H), lambda i: (0, 0)),        # W1[:Dx]
                pl.BlockSpec((Dc, H), lambda i: (0, 0)),        # W1[Dx:]
                pl.BlockSpec((1, H), lambda i: (0, 0)),         # b1
                pl.BlockSpec((H, Dx), lambda i: (0, 0)),        # W2
                pl.BlockSpec((1, Dx), lambda i: (0, 0)),        # b2
            ],
            out_specs=pl.BlockSpec((tm_eff, Dx), lambda i: (i, 0)),
        ),
        compiler_params=pltpu.CompilerParams(
            dimension_semantics=("parallel",),
            vmem_limit_bytes=32 << 20,
        ),
    )(x2, c2, w1x, w1c, b1r, w2c, b2r)

    if Mp != M:
        out = out[:M]
    return out.reshape(*batch_shape, Dx)


def _init_linear(key, fan_in, fan_out):
    # Deterministic stand-in for torch.nn.Linear default init (uniform +-1/sqrt(fan_in)).
    kw, kb = jax.random.split(key)
    bound = 1.0 / math.sqrt(fan_in)
    w = jax.random.uniform(kw, (fan_in, fan_out), jnp.float32, -bound, bound)
    b = jax.random.uniform(kb, (fan_out,), jnp.float32, -bound, bound)
    return w, b


if __name__ == "__main__":
    B, N = 2, 8           # batch, points
    x_dim, c_dim, h_dim = 32, 16, 64

    key = jax.random.PRNGKey(0)
    kx, kc, k1, k2 = jax.random.split(key, 4)

    x = jax.random.normal(kx, (B, N, x_dim), jnp.float32)
    c = jax.random.normal(kc, (B, N, c_dim), jnp.float32)

    w1, b1 = _init_linear(k1, x_dim + c_dim, h_dim)   # layer1: (x_dim+c_dim) -> h_dim
    w2, b2 = _init_linear(k2, h_dim, x_dim)           # layer2: h_dim -> x_dim

    out = res_unit(x, c, w1, b1, w2, b2)
    out = jax.block_until_ready(out)

    # Pure-JAX f32 reference; kernel computes in bf16 (f32 accumulate), so use
    # a bf16-appropriate tolerance.
    ctx = jnp.concatenate([x, c], axis=-1)
    h_ref = jnp.maximum(ctx @ w1 + b1, 0.0)
    ref = x + h_ref @ w2 + b2
    assert out.shape == (B, N, x_dim)
    assert jnp.allclose(out, ref, atol=3e-2, rtol=3e-2), (
        float(jnp.max(jnp.abs(out - ref))))

    print("KERNEL_OK")
</pallas_src>

<mosaic_0001>
module attributes {stable_mosaic.version = 11 : i64} {
  func.func @_res_unit_kernel(%arg0: i32, %arg1: memref<16x32xbf16, #tpu.memory_space<vmem>>, %arg2: memref<16x16xbf16, #tpu.memory_space<vmem>>, %arg3: memref<32x64xbf16, #tpu.memory_space<vmem>>, %arg4: memref<16x64xbf16, #tpu.memory_space<vmem>>, %arg5: memref<1x64xf32, #tpu.memory_space<vmem>>, %arg6: memref<64x32xbf16, #tpu.memory_space<vmem>>, %arg7: memref<1x32xf32, #tpu.memory_space<vmem>>, %arg8: memref<16x32xf32, #tpu.memory_space<vmem>>) attributes {dimension_semantics = [#tpu.dimension_semantics<parallel>], iteration_bounds = array<i64: 1>, scalar_prefetch = 0 : i64, scratch_operands = 0 : i64, tpu.core_type = #tpu.core_type<tc>, window_params = [{transform_indices = @transform_0, window_bounds = array<i64: 16, 32>}, {transform_indices = @transform_1, window_bounds = array<i64: 16, 16>}, {pipeline_mode = #tpu.pipeline_mode<synchronous>, transform_indices = @transform_2, window_bounds = array<i64: 32, 64>}, {pipeline_mode = #tpu.pipeline_mode<synchronous>, transform_indices = @transform_3, window_bounds = array<i64: 16, 64>}, {pipeline_mode = #tpu.pipeline_mode<synchronous>, transform_indices = @transform_4, window_bounds = array<i64: 1, 64>}, {pipeline_mode = #tpu.pipeline_mode<synchronous>, transform_indices = @transform_5, window_bounds = array<i64: 64, 32>}, {pipeline_mode = #tpu.pipeline_mode<synchronous>, transform_indices = @transform_6, window_bounds = array<i64: 1, 32>}, {transform_indices = @transform_7, window_bounds = array<i64: 16, 32>}]} {
    %c0 = arith.constant 0 : index
    %c0_0 = arith.constant 0 : index
    %0 = vector.load %arg1[%c0, %c0_0] : memref<16x32xbf16, #tpu.memory_space<vmem>>, vector<16x32xbf16>
    %c0_1 = arith.constant 0 : index
    %c0_2 = arith.constant 0 : index
    %1 = vector.load %arg2[%c0_1, %c0_2] : memref<16x16xbf16, #tpu.memory_space<vmem>>, vector<16x16xbf16>
    %c0_3 = arith.constant 0 : index
    %c0_4 = arith.constant 0 : index
    %2 = vector.load %arg3[%c0_3, %c0_4] : memref<32x64xbf16, #tpu.memory_space<vmem>>, vector<32x64xbf16>
    %cst = arith.constant dense<0.000000e+00> : vector<16x64xf32>
    %3 = tpu.matmul %0, %2, %cst {dimension_numbers = #tpu.dot_dimension_numbers<[1], [0], [0], [1], [0, 0, 1, 1], [], []>} : vector<16x32xbf16>, vector<32x64xbf16>, vector<16x64xf32> -> vector<16x64xf32>
    %c0_5 = arith.constant 0 : index
    %c0_6 = arith.constant 0 : index
    %4 = vector.load %arg4[%c0_5, %c0_6] : memref<16x64xbf16, #tpu.memory_space<vmem>>, vector<16x64xbf16>
    %cst_7 = arith.constant dense<0.000000e+00> : vector<16x64xf32>
    %5 = tpu.matmul %1, %4, %cst_7 {dimension_numbers = #tpu.dot_dimension_numbers<[1], [0], [0], [1], [0, 0, 1, 1], [], []>} : vector<16x16xbf16>, vector<16x64xbf16>, vector<16x64xf32> -> vector<16x64xf32>
    %6 = arith.addf %3, %5 : vector<16x64xf32>
    %c0_8 = arith.constant 0 : index
    %c0_9 = arith.constant 0 : index
    %7 = vector.load %arg5[%c0_8, %c0_9] : memref<1x64xf32, #tpu.memory_space<vmem>>, vector<1x64xf32>
    %8 = vector.broadcast %7 : vector<1x64xf32> to vector<16x64xf32>
    %9 = arith.addf %6, %8 : vector<16x64xf32>
    %cst_10 = arith.constant 0.000000e+00 : f32
    %10 = vector.broadcast %cst_10 : f32 to vector<16x64xf32>
    %11 = arith.maximumf %9, %10 : vector<16x64xf32>
    %12 = arith.extf %0 : vector<16x32xbf16> to vector<16x32xf32>
    %13 = arith.truncf %11 : vector<16x64xf32> to vector<16x64xbf16>
    %c0_11 = arith.constant 0 : index
    %c0_12 = arith.constant 0 : index
    %14 = vector.load %arg6[%c0_11, %c0_12] : memref<64x32xbf16, #tpu.memory_space<vmem>>, vector<64x32xbf16>
    %cst_13 = arith.constant dense<0.000000e+00> : vector<16x32xf32>
    %15 = tpu.matmul %13, %14, %cst_13 {dimension_numbers = #tpu.dot_dimension_numbers<[1], [0], [0], [1], [0, 0, 1, 1], [], []>} : vector<16x64xbf16>, vector<64x32xbf16>, vector<16x32xf32> -> vector<16x32xf32>
    %16 = arith.addf %12, %15 : vector<16x32xf32>
    %c0_14 = arith.constant 0 : index
    %c0_15 = arith.constant 0 : index
    %17 = vector.load %arg7[%c0_14, %c0_15] : memref<1x32xf32, #tpu.memory_space<vmem>>, vector<1x32xf32>
    %18 = vector.broadcast %17 : vector<1x32xf32> to vector<16x32xf32>
    %19 = arith.addf %16, %18 : vector<16x32xf32>
    %c0_16 = arith.constant 0 : index
    %c0_17 = arith.constant 0 : index
    %20 = vector.load %arg8[%c0_16, %c0_17] : memref<16x32xf32, #tpu.memory_space<vmem>>, vector<16x32xf32>
    tpu.vector_store %arg8[%c0_16, %c0_17], %19 {strides = array<i32>} : memref<16x32xf32, #tpu.memory_space<vmem>>, vector<16x32xf32>,
    return
  }
  func.func @transform_0(%arg0: i32) -> (i32, i32) {
    %c0_i32 = arith.constant 0 : i32
    %c0_i32_0 = arith.constant 0 : i32
    return %arg0, %c0_i32 : i32, i32
  }
  func.func @transform_1(%arg0: i32) -> (i32, i32) {
    %c0_i32 = arith.constant 0 : i32
    %c0_i32_0 = arith.constant 0 : i32
    return %arg0, %c0_i32 : i32, i32
  }
  func.func @transform_2(%arg0: i32) -> (i32, i32) {
    %c0_i32 = arith.constant 0 : i32
    %c0_i32_0 = arith.constant 0 : i32
    %c0_i32_1 = arith.constant 0 : i32
    return %c0_i32, %c0_i32_0 : i32, i32
  }
  func.func @transform_3(%arg0: i32) -> (i32, i32) {
    %c0_i32 = arith.constant 0 : i32
    %c0_i32_0 = arith.constant 0 : i32
    %c0_i32_1 = arith.constant 0 : i32
    return %c0_i32, %c0_i32_0 : i32, i32
  }
  func.func @transform_4(%arg0: i32) -> (i32, i32) {
    %c0_i32 = arith.constant 0 : i32
    %c0_i32_0 = arith.constant 0 : i32
    %c0_i32_1 = arith.constant 0 : i32
    return %c0_i32, %c0_i32_0 : i32, i32
  }
  func.func @transform_5(%arg0: i32) -> (i32, i32) {
    %c0_i32 = arith.constant 0 : i32
    %c0_i32_0 = arith.constant 0 : i32
    %c0_i32_1 = arith.constant 0 : i32
    return %c0_i32, %c0_i32_0 : i32, i32
  }
  func.func @transform_6(%arg0: i32) -> (i32, i32) {
    %c0_i32 = arith.constant 0 : i32
    %c0_i32_0 = arith.constant 0 : i32
    %c0_i32_1 = arith.constant 0 : i32
    return %c0_i32, %c0_i32_0 : i32, i32
  }
  func.func @transform_7(%arg0: i32) -> (i32, i32) {
    %c0_i32 = arith.constant 0 : i32
    %c0_i32_0 = arith.constant 0 : i32
    return %arg0, %c0_i32 : i32, i32
  }
}

</mosaic_0001>

<llo_original>
// kernel: tpu_custom_call.1
$region0: #{tpu_custom_call.1}
  #allocation0 [shape = 'u32[]', space=smem, size = 0x4, offset = 0x4, fixed_abs, tag = 'smem constant byte address 0x4 - core index']
  #allocation1 [shape = 'u32[144,128]{1,0:T(1,128)}', space=vmem, size = 0x12000, scoped, tag = 'internal scratch']
  %s0 = inlined_call_operand.vmem [shape: bf16[16,32], index: 0, kind: input, shape index: {}]
  %s1 = inlined_call_operand.vmem [shape: bf16[16,16], index: 1, kind: input, shape index: {}]
  %s2 = inlined_call_operand.vmem [shape: bf16[32,64], index: 2, kind: input, shape index: {}]
  %s3 = inlined_call_operand.vmem [shape: bf16[16,64], index: 3, kind: input, shape index: {}]
  %s4 = inlined_call_operand.vmem [shape: f32[1,64], index: 4, kind: input, shape index: {}]
  %s5 = inlined_call_operand.vmem [shape: bf16[64,32], index: 5, kind: input, shape index: {}]
  %s6 = inlined_call_operand.vmem [shape: f32[1,32], index: 6, kind: input, shape index: {}]
  %s7 = inlined_call_operand.hbm [shape: f32[16,32], index: 7, kind: output, shape index: {}]
  %s8 = sld [smem:[#allocation0]]
  $region38: #{tpu_custom_call.1} parent=0
    _
  %s10 = ssub.s32 1, %s8
  %s11 = scalar_select 0, %s10, %s8
  $region1: #{tpu_custom_call.1} parent=0
    #allocation2 [shape = 'u8[8192]{0}', space=vmem, size = 0x2000, scoped, tag = 'output window, operand 0, single buffered']
    #allocation3 [shape = 's32[1]{0}', space=sflag, size = 0x4, scoped, tag = 'scoped memory for tpu_custom_call.1']
    %12 = vsyncpa [#allocation3], 0
    // Predicated region
    $region2: #{tpu_custom_call.1} parent=1 // pred_check
      _
    $region3: #{tpu_custom_call.1} parent=1 // pred_check_branch
      %14 = sbr.rel (0) target = $region5
    $region4: #{tpu_custom_call.1} parent=1 // pred_region
      _
    $region5: #{tpu_custom_call.1} parent=1 // pred_fallthru
      _
    // Predicated region
    $region6: #{tpu_custom_call.1} parent=1 // pred_check
      _
    $region7: #{tpu_custom_call.1} parent=1 // pred_check_branch
      %16 = sbr.rel (0) target = $region9
    $region8: #{tpu_custom_call.1} parent=1 // pred_region
      _
    $region9: #{tpu_custom_call.1} parent=1 // pred_fallthru
      _
    // Predicated region
    $region10: #{tpu_custom_call.1} parent=1 // pred_check
      _
    $region11: #{tpu_custom_call.1} parent=1 // pred_check_branch
      %18 = sbr.rel (0) target = $region13
    $region12: #{tpu_custom_call.1} parent=1 // pred_region
      _
    $region13: #{tpu_custom_call.1} parent=1 // pred_fallthru
      _
    // Predicated region
    $region14: #{tpu_custom_call.1} parent=1 // pred_check
      _
    $region15: #{tpu_custom_call.1} parent=1 // pred_check_branch
      %20 = sbr.rel (0) target = $region17
    $region16: #{tpu_custom_call.1} parent=1 // pred_region
      _
    $region17: #{tpu_custom_call.1} parent=1 // pred_fallthru
      _
    // Predicated region
    $region18: #{tpu_custom_call.1} parent=1 // pred_check
      _
    $region19: #{tpu_custom_call.1} parent=1 // pred_check_branch
      %22 = sbr.rel (0) target = $region21
    $region20: #{tpu_custom_call.1} parent=1 // pred_region
      _
    $region21: #{tpu_custom_call.1} parent=1 // pred_fallthru
      _
    // Predicated region
    $region22: #{tpu_custom_call.1} parent=1 // pred_check
      _
    $region23: #{tpu_custom_call.1} parent=1 // pred_check_branch
      %24 = sbr.rel (0) target = $region25
    $region24: #{tpu_custom_call.1} parent=1 // pred_region
      _
    $region25: #{tpu_custom_call.1} parent=1 // pred_fallthru
      _
    // Predicated region
    $region26: #{tpu_custom_call.1} parent=1 // pred_check
      _
    $region27: #{tpu_custom_call.1} parent=1 // pred_check_branch
      %26 = sbr.rel (0) target = $region29
    $region28: #{tpu_custom_call.1} parent=1 // pred_region
      _
    $region29: #{tpu_custom_call.1} parent=1 // pred_fallthru
      _
    %v28 = vld [vmem:[%s0] sm:$0xf]
    %v29 = vld [vmem:[%s0 + $0x4] sm:$0xf]
    %v30 = vld [vmem:[%s1] sm:$0xf]
    %v31 = vld [vmem:[%s1 + $0x4] sm:$0xf]
    %v32 = vld [vmem:[%s2] sm:$0xf]
    %v33 = vld [vmem:[%s2 + $0x4] sm:$0xf]
    %v34 = vld [vmem:[%s2 + $0x8] sm:$0xf]
    %v35 = vld [vmem:[%s2 + $0xc] sm:$0xf]
    %v36 = vld [vmem:[%s3] sm:$0xf]
    %v37 = vld [vmem:[%s3 + $0x4] sm:$0xf]
    %v40 = vunpack.c.l.b16 %v30
    %v41 = vunpack.c.l.b16 %v31
    %v42 = vpack.c.b16 %v41, %v40
    %v45 = vunpack.c.l.b16 %v36
    %v46 = vunpack.c.l.b16 %v37
    %v47 = vpack.c.b16 %v46, %v45
    %vm49 = vcmask 130048
    %v51 = vsel %vm49, %v42, 0
    %53 = vmatprep.subr.bf16.mxu0 0
    %54 = vmatpush1.bf16.msra.mxu0 %v47
    %55 = vmatprep.subr.bf16.mxu0 0
    %56 = vmatpush1.bf16.msra.mxu0 0
    %57 = vmatprep.subr.bf16.mxu0 0
    %58 = vmatpush1.bf16.msra.mxu0 0
    %59 = vmatprep.subr.bf16.mxu0 0
    %60 = vmatpush1.bf16.msra.mxu0 0
    %61 = vmatprep.subr.bf16.mxu0 0
    %62 = vmatpush1.bf16.msra.mxu0 0
    %63 = vmatprep.subr.bf16.mxu0 0
    %64 = vmatpush1.bf16.msra.mxu0 0
    %65 = vmatprep.subr.bf16.mxu0 0
    %66 = vmatpush1.bf16.msra.mxu0 0
    %67 = vmatprep.subr.bf16.mxu0 0
    %68 = vmatpush1.bf16.msra.mxu0 0
    %69 = vmatprep.subr.bf16.mxu0 0
    %70 = vmatpush1.bf16.msra.mxu0 0
    %71 = vmatprep.subr.bf16.mxu0 0
    %72 = vmatpush1.bf16.msra.mxu0 0
    %73 = vmatprep.subr.bf16.mxu0 0
    %74 = vmatpush1.bf16.msra.mxu0 0
    %75 = vmatprep.subr.bf16.mxu0 0
    %76 = vmatpush1.bf16.msra.mxu0 0
    %77 = vmatprep.subr.bf16.mxu0 0
    %78 = vmatpush1.bf16.msra.mxu0 0
    %79 = vmatprep.subr.bf16.mxu0 0
    %80 = vmatpush1.bf16.msra.mxu0 0
    %81 = vmatprep.subr.bf16.mxu0 0
    %82 = vmatpush1.bf16.msra.mxu0 0
    %83 = vmatprep.subr.bf16.mxu0 0
    %84 = vmatpush1.bf16.msra.mxu0 0
    %85 = vmatprep.mubr.bf16.mxu0 0
    %86 = vmatmul.mubr.bf16.gmra.mrb[0].mxu0 %v51
    %v87 = vpop.f32.mrb[0].mxu0
    %v88 = vadd.f32 0.0, %v87
    %v89 = vpop.f32.mrb[0].mxu0
    %v90 = vpop.f32.mrb[0].mxu0
    %v91 = vadd.f32 0.0, %v90
    %v92 = vpop.f32.mrb[0].mxu0
    %93 = vdwg.mxu0
    %v96 = vunpack.c.l.b16 %v28
    %v97 = vunpack.c.l.b16 %v29
    %v98 = vpack.c.b16 %v97, %v96
    %v103 = vunpack.c.l.b16 %v32
    %v104 = vunpack.c.l.b16 %v33
    %v105 = vunpack.c.l.b16 %v34
    %v106 = vunpack.c.l.b16 %v35
    %v107 = vpack.c.b16 %v104, %v103
    %v108 = vpack.c.b16 %v106, %v105
    %vm111 = vcmask 261120
    %v113 = vsel %vm111, %v98, 0
    %115 = vmatprep.subr.bf16.mxu0 0
    %116 = vmatpush1.bf16.msra.mxu0 %v107
    %117 = vmatprep.subr.bf16.mxu0 0
    %118 = vmatpush1.bf16.msra.mxu0 %v108
    %119 = vmatprep.subr.bf16.mxu0 0
    %120 = vmatpush1.bf16.msra.mxu0 0
    %121 = vmatprep.subr.bf16.mxu0 0
    %122 = vmatpush1.bf16.msra.mxu0 0
    %123 = vmatprep.subr.bf16.mxu0 0
    %124 = vmatpush1.bf16.msra.mxu0 0
    %125 = vmatprep.subr.bf16.mxu0 0
    %126 = vmatpush1.bf16.msra.mxu0 0
    %127 = vmatprep.subr.bf16.mxu0 0
    %128 = vmatpush1.bf16.msra.mxu0 0
    %129 = vmatprep.subr.bf16.mxu0 0
    %130 = vmatpush1.bf16.msra.mxu0 0
    %131 = vmatprep.subr.bf16.mxu0 0
    %132 = vmatpush1.bf16.msra.mxu0 0
    %133 = vmatprep.subr.bf16.mxu0 0
    %134 = vmatpush1.bf16.msra.mxu0 0
    %135 = vmatprep.subr.bf16.mxu0 0
    %136 = vmatpush1.bf16.msra.mxu0 0
    %137 = vmatprep.subr.bf16.mxu0 0
    %138 = vmatpush1.bf16.msra.mxu0 0
    %139 = vmatprep.subr.bf16.mxu0 0
    %140 = vmatpush1.bf16.msra.mxu0 0
    %141 = vmatprep.subr.bf16.mxu0 0
    %142 = vmatpush1.bf16.msra.mxu0 0
    %143 = vmatprep.subr.bf16.mxu0 0
    %144 = vmatpush1.bf16.msra.mxu0 0
    %145 = vmatprep.subr.bf16.mxu0 0
    %146 = vmatpush1.bf16.msra.mxu0 0
    %147 = vmatprep.mubr.bf16.mxu0 0
    %148 = vmatmul.mubr.bf16.gmra.mrb[0].mxu0 %v113
    %v149 = vpop.f32.mrb[0].mxu0
    %v150 = vadd.f32 %v88, %v149
    %v151 = vpop.f32.mrb[0].mxu0
    %v152 = vpop.f32.mrb[0].mxu0
    %v153 = vadd.f32 %v91, %v152
    %v154 = vpop.f32.mrb[0].mxu0
    %155 = vdwg.mxu0
    %v156 = vld [vmem:[%s4] sm:$0x1]
    %v158 = vlaneseq
    %v159 = vshrl.u32 %v158, 7
    %v160 = vsub.s32 0, %v159
    %v161 = vrot.slane %v156, %v160
    %v163 = vadd.f32 %v150, %v161
    %v164 = vadd.f32 %v153, %v161
    %v165 = vmax.f32 %v163, 0.0
    %v166 = vmax.f32 %v164, 0.0
    %v167 = vunpack.c.l.bf16 %v28
    %v168 = vunpack.c.l.bf16 %v29
    %v169 = vpack.c.bf16 %v166, %v165
    %v170 = vld [vmem:[%s5] sm:$0xf]
    %v171 = vld [vmem:[%s5 + $0x4] sm:$0xf]
    %v172 = vld [vmem:[%s5 + $0x8] sm:$0xf]
    %v173 = vld [vmem:[%s5 + $0xc] sm:$0xf]
    %v174 = vld [vmem:[%s5 + $0x10] sm:$0xf]
    %v175 = vld [vmem:[%s5 + $0x14] sm:$0xf]
    %v176 = vld [vmem:[%s5 + $0x18] sm:$0xf]
    %v177 = vld [vmem:[%s5 + $0x1c] sm:$0xf]
    %v186 = vunpack.c.l.b16 %v170
    %v187 = vunpack.c.l.b16 %v171
    %v188 = vunpack.c.l.b16 %v172
    %v189 = vunpack.c.l.b16 %v173
    %v190 = vunpack.c.l.b16 %v174
    %v191 = vunpack.c.l.b16 %v175
    %v192 = vunpack.c.l.b16 %v176
    %v193 = vunpack.c.l.b16 %v177
    %v194 = vpack.c.b16 %v187, %v186
    %v195 = vpack.c.b16 %v189, %v188
    %v196 = vpack.c.b16 %v191, %v190
    %v197 = vpack.c.b16 %v193, %v192
    %vm202 = vcmask 523264
    %v204 = vsel %vm202, %v169, 0
    %206 = vmatprep.subr.bf16.mxu0 0
    %207 = vmatpush1.bf16.msra.mxu0 %v194
    %208 = vmatprep.subr.bf16.mxu0 0
    %209 = vmatpush1.bf16.msra.mxu0 %v195
    %210 = vmatprep.subr.bf16.mxu0 0
    %211 = vmatpush1.bf16.msra.mxu0 %v196
    %212 = vmatprep.subr.bf16.mxu0 0
    %213 = vmatpush1.bf16.msra.mxu0 %v197
    %214 = vmatprep.subr.bf16.mxu0 0
    %215 = vmatpush1.bf16.msra.mxu0 0
    %216 = vmatprep.subr.bf16.mxu0 0
    %217 = vmatpush1.bf16.msra.mxu0 0
    %218 = vmatprep.subr.bf16.mxu0 0
    %219 = vmatpush1.bf16.msra.mxu0 0
    %220 = vmatprep.subr.bf16.mxu0 0
    %221 = vmatpush1.bf16.msra.mxu0 0
    %222 = vmatprep.subr.bf16.mxu0 0
    %223 = vmatpush1.bf16.msra.mxu0 0
    %224 = vmatprep.subr.bf16.mxu0 0
    %225 = vmatpush1.bf16.msra.mxu0 0
    %226 = vmatprep.subr.bf16.mxu0 0
    %227 = vmatpush1.bf16.msra.mxu0 0
    %228 = vmatprep.subr.bf16.mxu0 0
    %229 = vmatpush1.bf16.msra.mxu0 0
    %230 = vmatprep.subr.bf16.mxu0 0
    %231 = vmatpush1.bf16.msra.mxu0 0
    %232 = vmatprep.subr.bf16.mxu0 0
    %233 = vmatpush1.bf16.msra.mxu0 0
    %234 = vmatprep.subr.bf16.mxu0 0
    %235 = vmatpush1.bf16.msra.mxu0 0
    %236 = vmatprep.subr.bf16.mxu0 0
    %237 = vmatpush1.bf16.msra.mxu0 0
    %238 = vmatprep.mubr.bf16.mxu0 0
    %239 = vmatmul.mubr.bf16.gmra.mrb[0].mxu0 %v204
    %v240 = vpop.f32.mrb[0].mxu0
    %v241 = vadd.f32 0.0, %v240
    %v242 = vpop.f32.mrb[0].mxu0
    %v243 = vpop.f32.mrb[0].mxu0
    %v244 = vadd.f32 0.0, %v243
    %v245 = vpop.f32.mrb[0].mxu0
    %246 = vdwg.mxu0
    %v247 = vadd.f32 %v167, %v241
    %v248 = vadd.f32 %v168, %v244
    %v249 = vld [vmem:[%s6] sm:$0x1]
    %v251 = vlaneseq
    %v252 = vshrl.u32 %v251, 7
    %v253 = vsub.s32 0, %v252
    %v254 = vrot.slane %v249, %v253
    %v256 = vadd.f32 %v247, %v254
    %v257 = vadd.f32 %v248, %v254
    %258 = vst.msk [vmem:[#allocation2] sm:$0xff] %vm111, %v256
    %259 = vst.msk [vmem:[#allocation2 + $0x8] sm:$0xff] %vm111, %v257
    // Predicated region
    $region30: #{tpu_custom_call.1} parent=1 // pred_check
      _
    $region31: #{tpu_custom_call.1} parent=1 // pred_check_branch
      %261 = sbr.rel (0) target = $region33
    $region32: #{tpu_custom_call.1} parent=1 // pred_region
      %s263 = ssub.s32 256, 256
      %264 = vsyncadd [#allocation3], %s263
      %s265 = sshll.u32 [#allocation2], 4
      %s266 = int_to_ptr.vmem [resolvable:$true] %s265
      %271 = dma.vmem_to_hbm [thread:$0]  %s266, 256, %s7, [#allocation3], 128, 128, 8
    $region33: #{tpu_custom_call.1} parent=1 // pred_fallthru
      _
    // Predicated region
    $region34: #{tpu_custom_call.1} parent=1 // pred_check
      _
    $region35: #{tpu_custom_call.1} parent=1 // pred_check_branch
      %273 = sbr.rel (0) target = $region37
    $region36: #{tpu_custom_call.1} parent=1 // pred_region
      %274 = dma.done [#allocation3], 256
    $region37: #{tpu_custom_call.1} parent=1 // pred_fallthru
      _
    %275 = vsyncpa [#allocation3], 1

</llo_original>
